<compile_context>
chip_gen: v6e
topology: v6e:2x2x1
jax: 0.10.0
libtpu: 0.0.40
codegen_flags: <defaults>
</compile_context>

<pallas_src>
import functools

import jax
import jax.numpy as jnp
from jax.experimental import pallas as pl
from jax.experimental.pallas import tpu as pltpu


def make_quaternion_conv_weight(r_w, i_w, j_w, k_w):
    """Reproduces the PyTorch weight construction + transpose(1, 0).

    r/i/j/k weights: (in_channels, out_channels, KH, KW).
    Returns OIHW weight of shape (4*out_channels, 4*in_channels, KH, KW).
    """
    col0 = jnp.concatenate([r_w, -i_w, -j_w, -k_w], axis=0)
    col1 = jnp.concatenate([i_w, r_w, -k_w, j_w], axis=0)
    col2 = jnp.concatenate([j_w, k_w, r_w, -i_w], axis=0)
    col3 = jnp.concatenate([k_w, -j_w, i_w, r_w], axis=0)
    weight = jnp.concatenate([col0, col1, col2, col3], axis=1)  # (4*in, 4*out, KH, KW)
    return jnp.transpose(weight, (1, 0, 2, 3))                  # (4*out, 4*in, KH, KW)


def _round_up(v, m):
    return -(-v // m) * m


def _pick_batch_block(batch, per_image_bytes, *, max_block_bytes=2 * 1024 * 1024,
                      min_grid=8):
    """Largest divisor of `batch` keeping >= min(min_grid, batch) grid steps and a
    bounded VMEM block (keeps v7x's 2 TCs pipelined before growing the block)."""
    best = 1
    for cand in range(1, batch + 1):
        if batch % cand != 0:
            continue
        if cand * per_image_bytes > max_block_bytes:
            break
        if batch // cand < min(min_grid, batch):
            break
        best = cand
    return best


def _qconv_kernel(x_ref, w_ref, b_ref, o_ref, *, taps, out_len, bblk):
    # x_ref: (bblk, Cin, S)    channel-major, flattened padded spatial (compute dtype)
    # w_ref: (Cout, K)         K = KH*KW*Cin, tap-major / cin-minor (compute dtype)
    # b_ref: (Cout, 1)         bias column (f32)
    # o_ref: (bblk, Cout, L)   L = OH_full * Wp (lane-dense minor dim)
    w = w_ref[...]                                   # (Cout, K)
    bias = b_ref[...]                                # (Cout, 1) f32
    for b in range(bblk):                            # static unroll; bblk is small
        # Load the image once; cast to f32 so the 8-row tap slabs are tile-aligned
        # for the sublane concatenation (bf16 packs 16 sublanes per vreg).
        xb = x_ref[b].astype(jnp.float32)            # (Cin, S)
        # Each tap is a pure lane-offset slice of the flattened image; stacking the
        # KH*KW slabs along sublanes builds the (K, L) patch matrix -> ONE matmul.
        pt = jnp.concatenate([xb[:, off:off + out_len] for off in taps], axis=0)
        y = jnp.dot(w, pt.astype(w.dtype),           # (Cout, L), f32 MXU accumulation
                    preferred_element_type=jnp.float32)
        o_ref[b] = (y + bias).astype(o_ref.dtype)


def qconv2d_forward(x, r_w, i_w, j_w, k_w, bias, *, stride=1, padding=0, dilation=1,
                    compute_dtype=jnp.bfloat16):
    """Quaternion conv2d forward (groups=1).  x: NCHW.

    compute_dtype=jnp.float32 gives an f32-feed path if bit-closeness to the f32
    PyTorch module is required (default bf16 feed / f32 accumulation for the MXU).
    """
    W_oihw = make_quaternion_conv_weight(r_w, i_w, j_w, k_w)   # (Cout, Cin, KH, KW)

    B, Cin, H, Wd = x.shape
    Cout, Cin_w, KH, KW = W_oihw.shape
    assert Cin == Cin_w, (Cin, Cin_w)

    sH = sW = int(stride)
    pH = pW = int(padding)
    dH = dW = int(dilation)

    Hp, Wp = H + 2 * pH, Wd + 2 * pW
    OHf = Hp - dH * (KH - 1)          # stride-1 output extents
    OWf = Wp - dW * (KW - 1)
    assert OHf >= 1 and OWf >= 1, "kernel does not fit in the padded input"
    OH = (OHf - 1) // sH + 1          # final (strided) output extents
    OW = (OWf - 1) // sW + 1

    extra = (KW - 1) * dW             # flat-axis tail so every tap slice stays in-bounds
    S = Hp * Wp + extra
    Lout = OHf * Wp                   # lane-dense output length per image
    K = KH * KW * Cin

    # --- Host-side layout prep (each a single 1x relayout of the data) ---------------
    # Channel-major, flattened padded spatial as the minor dim: contiguous DMA rows.
    x_flat = jnp.pad(x, ((0, 0), (0, 0), (pH, pH), (pW, pW))).reshape(B, Cin, Hp * Wp)
    x_flat = jnp.pad(x_flat, ((0, 0), (0, 0), (0, extra))).astype(compute_dtype)

    # Weight as (Cout, K) with K ordered (kh, kw, cin) to match the kernel's tap stack.
    w2 = jnp.transpose(W_oihw, (0, 2, 3, 1)).reshape(Cout, K).astype(compute_dtype)
    bias_col = bias.reshape(Cout, 1).astype(jnp.float32)

    # Per-tap lane offsets into the flattened padded image (dilation folds in here).
    taps = tuple(kh * dH * Wp + kw * dW for kh in range(KH) for kw in range(KW))

    # --- Blocking / VMEM budget -------------------------------------------------------
    cbytes = jnp.dtype(compute_dtype).itemsize
    obytes = jnp.dtype(x.dtype).itemsize
    per_img = (_round_up(Cin, 16) * _round_up(S, 128) * cbytes          # x block
               + _round_up(Cout, 8) * _round_up(Lout, 128) * obytes)    # out block
    bblk = _pick_batch_block(B, per_img)
    grid = (B // bblk,)

    shared = (_round_up(K, 16) * _round_up(Lout, 128) * (4 + cbytes)    # patch f32 + repack
              + _round_up(Cout, 8) * _round_up(Lout, 128) * 4           # matmul acc
              + _round_up(Cout, 16) * _round_up(K, 128) * cbytes        # weights
              + 8 * 128 * 4)                                            # bias
    footprint = 2 * bblk * per_img + shared                             # double-buffered I/O
    vmem_limit = int(min(32 * 1024 * 1024, max(16 * 1024 * 1024, 8 * footprint)))

    kernel = functools.partial(_qconv_kernel, taps=taps, out_len=Lout, bblk=bblk)

    out_flat = pl.pallas_call(
        kernel,
        out_shape=jax.ShapeDtypeStruct((B, Cout, Lout), x.dtype),
        grid=grid,
        in_specs=[
            pl.BlockSpec((bblk, Cin, S), lambda g: (g, 0, 0)),
            # Constant block index across the grid -> DMA'd once.
            pl.BlockSpec((Cout, K), lambda g: (0, 0)),
            pl.BlockSpec((Cout, 1), lambda g: (0, 0)),
        ],
        out_specs=pl.BlockSpec((bblk, Cout, Lout), lambda g: (g, 0, 0)),
        compiler_params=pltpu.CompilerParams(
            dimension_semantics=("parallel",),
            vmem_limit_bytes=vmem_limit,
        ),
    )(x_flat, w2, bias_col)

    # Drop the per-row garbage columns (flat trick), then apply stride by subsampling.
    out = out_flat.reshape(B, Cout, OHf, Wp)[:, :, :, :OWf]
    if sH != 1 or sW != 1:
        out = out[:, :, ::sH, ::sW]
    assert out.shape == (B, Cout, OH, OW)
    return out


if __name__ == "__main__":
    # QConv2d(in_channels=2, out_channels=2, kernel_size=3, stride=1, padding=1)
    in_channels, out_channels, ksize = 2, 2, 3
    stride, padding, dilation = 1, 1, 1
    B, H, W = 2, 16, 16

    key = jax.random.PRNGKey(0)
    kx, kr, ki, kj, kk = jax.random.split(key, 5)

    x = jax.random.normal(kx, (B, 4 * in_channels, H, W), dtype=jnp.float32)
    # Deterministic stand-in for initialize_conv(): components are (in, out, KH, KW).
    wshape = (in_channels, out_channels, ksize, ksize)
    r_w = jax.random.normal(kr, wshape, dtype=jnp.float32) * 0.1
    i_w = jax.random.normal(ki, wshape, dtype=jnp.float32) * 0.1
    j_w = jax.random.normal(kj, wshape, dtype=jnp.float32) * 0.1
    k_w = jax.random.normal(kk, wshape, dtype=jnp.float32) * 0.1
    bias = jnp.zeros((4 * out_channels,), dtype=jnp.float32)  # module inits bias to zeros

    out = qconv2d_forward(
        x, r_w, i_w, j_w, k_w, bias,
        stride=stride, padding=padding, dilation=dilation,
    )
    out = jax.block_until_ready(out)

    # References (same semantics as F.conv2d, NCHW / OIHW).
    W_oihw = make_quaternion_conv_weight(r_w, i_w, j_w, k_w)
    conv = functools.partial(
        jax.lax.conv_general_dilated,
        window_strides=(stride, stride),
        padding=((padding, padding), (padding, padding)),
        rhs_dilation=(dilation, dilation),
        dimension_numbers=("NCHW", "OIHW", "NCHW"),
    )
    bias_nchw = bias.reshape(1, -1, 1, 1)
    ref_f32 = conv(x, W_oihw) + bias_nchw
    # Apples-to-apples reference with the same bf16 inputs / f32 accumulation.
    ref_bf16 = conv(x.astype(jnp.bfloat16), W_oihw.astype(jnp.bfloat16),
                    preferred_element_type=jnp.float32) + bias_nchw

    assert out.shape == (B, 4 * out_channels, H, W), out.shape
    assert jnp.allclose(out, ref_bf16, atol=2e-2, rtol=2e-2), \
        float(jnp.max(jnp.abs(out - ref_bf16)))
    assert jnp.allclose(out, ref_f32, atol=6e-2, rtol=6e-2), \
        float(jnp.max(jnp.abs(out - ref_f32)))
    print("KERNEL_OK")
</pallas_src>

<mosaic_0001>
module attributes {stable_mosaic.version = 11 : i64} {
  func.func @_qconv_kernel(%arg0: i32, %arg1: memref<1x8x326xbf16, #tpu.memory_space<vmem>>, %arg2: memref<8x72xbf16, #tpu.memory_space<vmem>>, %arg3: memref<8x1xf32, #tpu.memory_space<vmem>>, %arg4: memref<1x8x288xf32, #tpu.memory_space<vmem>>) attributes {dimension_semantics = [#tpu.dimension_semantics<parallel>], iteration_bounds = array<i64: 2>, scalar_prefetch = 0 : i64, scratch_operands = 0 : i64, tpu.core_type = #tpu.core_type<tc>, window_params = [{transform_indices = @transform_0, window_bounds = array<i64: 1, 8, 326>}, {pipeline_mode = #tpu.pipeline_mode<synchronous>, transform_indices = @transform_1, window_bounds = array<i64: 8, 72>}, {pipeline_mode = #tpu.pipeline_mode<synchronous>, transform_indices = @transform_2, window_bounds = array<i64: 8, 1>}, {transform_indices = @transform_3, window_bounds = array<i64: 1, 8, 288>}]} {
    %c0 = arith.constant 0 : index
    %c0_0 = arith.constant 0 : index
    %0 = vector.load %arg2[%c0, %c0_0] : memref<8x72xbf16, #tpu.memory_space<vmem>>, vector<8x72xbf16>
    %c0_1 = arith.constant 0 : index
    %c0_2 = arith.constant 0 : index
    %1 = vector.load %arg3[%c0_1, %c0_2] : memref<8x1xf32, #tpu.memory_space<vmem>>, vector<8x1xf32>
    %c0_3 = arith.constant 0 : index
    %c0_4 = arith.constant 0 : index
    %c0_5 = arith.constant 0 : index
    %2 = vector.load %arg1[%c0_3, %c0_4, %c0_5] : memref<1x8x326xbf16, #tpu.memory_space<vmem>>, vector<1x8x326xbf16>
    %3 = vector.shape_cast %2 : vector<1x8x326xbf16> to vector<8x326xbf16>
    %4 = arith.extf %3 : vector<8x326xbf16> to vector<8x326xf32>
    %5 = vector.extract_strided_slice %4 {offsets = [0, 0], sizes = [8, 288], strides = [1, 1]} : vector<8x326xf32> to vector<8x288xf32>
    %6 = vector.extract_strided_slice %4 {offsets = [0, 1], sizes = [8, 288], strides = [1, 1]} : vector<8x326xf32> to vector<8x288xf32>
    %7 = vector.extract_strided_slice %4 {offsets = [0, 2], sizes = [8, 288], strides = [1, 1]} : vector<8x326xf32> to vector<8x288xf32>
    %8 = vector.extract_strided_slice %4 {offsets = [0, 18], sizes = [8, 288], strides = [1, 1]} : vector<8x326xf32> to vector<8x288xf32>
    %9 = vector.extract_strided_slice %4 {offsets = [0, 19], sizes = [8, 288], strides = [1, 1]} : vector<8x326xf32> to vector<8x288xf32>
    %10 = vector.extract_strided_slice %4 {offsets = [0, 20], sizes = [8, 288], strides = [1, 1]} : vector<8x326xf32> to vector<8x288xf32>
    %11 = vector.extract_strided_slice %4 {offsets = [0, 36], sizes = [8, 288], strides = [1, 1]} : vector<8x326xf32> to vector<8x288xf32>
    %12 = vector.extract_strided_slice %4 {offsets = [0, 37], sizes = [8, 288], strides = [1, 1]} : vector<8x326xf32> to vector<8x288xf32>
    %13 = vector.extract_strided_slice %4 {offsets = [0, 38], sizes = [8, 288], strides = [1, 1]} : vector<8x326xf32> to vector<8x288xf32>
    %14 = tpu.concatenate %5, %6, %7, %8, %9, %10, %11, %12, %13 in 0 : vector<8x288xf32>, vector<8x288xf32>, vector<8x288xf32>, vector<8x288xf32>, vector<8x288xf32>, vector<8x288xf32>, vector<8x288xf32>, vector<8x288xf32>, vector<8x288xf32> -> vector<72x288xf32>
    %15 = arith.truncf %14 : vector<72x288xf32> to vector<72x288xbf16>
    %cst = arith.constant dense<0.000000e+00> : vector<8x288xf32>
    %16 = tpu.matmul %0, %15, %cst {dimension_numbers = #tpu.dot_dimension_numbers<[1], [0], [0], [1], [0, 0, 1, 1], [], []>} : vector<8x72xbf16>, vector<72x288xbf16>, vector<8x288xf32> -> vector<8x288xf32>
    %17 = vector.broadcast %1 : vector<8x1xf32> to vector<8x288xf32>
    %18 = arith.addf %16, %17 : vector<8x288xf32>
    %c0_6 = arith.constant 0 : index
    %c0_7 = arith.constant 0 : index
    %c0_8 = arith.constant 0 : index
    %19 = vector.load %arg4[%c0_6, %c0_7, %c0_8] : memref<1x8x288xf32, #tpu.memory_space<vmem>>, vector<1x8x288xf32>
    %20 = vector.shape_cast %19 : vector<1x8x288xf32> to vector<8x288xf32>
    %21 = vector.shape_cast %18 : vector<8x288xf32> to vector<1x8x288xf32>
    tpu.vector_store %arg4[%c0_6, %c0_7, %c0_8], %21 {strides = array<i32>} : memref<1x8x288xf32, #tpu.memory_space<vmem>>, vector<1x8x288xf32>,
    return
  }
  func.func @transform_0(%arg0: i32) -> (i32, i32, i32) {
    %c0_i32 = arith.constant 0 : i32
    %c0_i32_0 = arith.constant 0 : i32
    %c0_i32_1 = arith.constant 0 : i32
    return %arg0, %c0_i32, %c0_i32_0 : i32, i32, i32
  }
  func.func @transform_1(%arg0: i32) -> (i32, i32) {
    %c0_i32 = arith.constant 0 : i32
    %c0_i32_0 = arith.constant 0 : i32
    %c0_i32_1 = arith.constant 0 : i32
    return %c0_i32, %c0_i32_0 : i32, i32
  }
  func.func @transform_2(%arg0: i32) -> (i32, i32) {
    %c0_i32 = arith.constant 0 : i32
    %c0_i32_0 = arith.constant 0 : i32
    %c0_i32_1 = arith.constant 0 : i32
    return %c0_i32, %c0_i32_0 : i32, i32
  }
  func.func @transform_3(%arg0: i32) -> (i32, i32, i32) {
    %c0_i32 = arith.constant 0 : i32
    %c0_i32_0 = arith.constant 0 : i32
    %c0_i32_1 = arith.constant 0 : i32
    return %arg0, %c0_i32, %c0_i32_0 : i32, i32, i32
  }
}

</mosaic_0001>

<llo_original>
// kernel: tpu_custom_call.1
$region0: #{tpu_custom_call.1}
  #allocation0 [shape = 'u32[]', space=smem, size = 0x4, offset = 0x4, fixed_abs, tag = 'smem constant byte address 0x4 - core index']
  #allocation1 [shape = 'u32[144,128]{1,0:T(1,128)}', space=vmem, size = 0x12000, scoped, tag = 'internal scratch']
  %s0 = inlined_call_operand.hbm [shape: bf16[2,8,326], index: 0, kind: input, shape index: {}]
  %s1 = inlined_call_operand.vmem [shape: bf16[8,72], index: 1, kind: input, shape index: {}]
  %s2 = inlined_call_operand.vmem [shape: f32[8,1], index: 2, kind: input, shape index: {}]
  %s3 = inlined_call_operand.hbm [shape: f32[2,8,288], index: 3, kind: output, shape index: {}]
  %s4 = sld [smem:[#allocation0]]
  $region49: #{tpu_custom_call.1} parent=0
    _
  %s6 = ssub.s32 1, %s4
  %s7 = scalar_select 0, %s6, %s4
  $region1: #{tpu_custom_call.1} parent=0
    #allocation2 [shape = 'u8[12288]{0}', space=vmem, size = 0x3000, scoped, tag = 'input window, operand 0']
    #allocation3 [shape = 's32[2]{0}', space=sflag, size = 0x8, scoped, tag = 'scoped memory for tpu_custom_call.1']
    #allocation4 [shape = 's32[2]{0}', space=sflag, size = 0x8, scoped, tag = 'scoped memory for tpu_custom_call.1']
    #allocation5 [shape = 'u8[24576]{0}', space=vmem, size = 0x6000, scoped, tag = 'output window, operand 0']
    %8 = vsyncpa [#allocation3], 0
    %s9 = scalar_lea.sflag [#allocation3], 1
    %10 = vsyncpa %s9, 0
    %11 = vsyncpa [#allocation4], 0
    %s12 = scalar_lea.sflag [#allocation4], 1
    %13 = vsyncpa %s12, 0
    loop: start=0, step=1, limit=4
    $region2: #{tpu_custom_call.1} parent=1 // loop_pre_header
      _
    $region3: #{tpu_custom_call.1} parent=1 // loop_header
      %s15 = sphi 0, %s19
      %p16 = scmp.ge.s32.totalorder %s15, 4
      %s25 = sphi 0, %s27
      %s28 = sphi 0, %s25
      %s29 = sphi 0, %s28
      %s45 = sphi 0, %s29
      %s49 = sphi 0, %s49
      %s51 = sphi 0, %s49
      %s52 = sphi 0, %s51
      %s66 = sphi 0, %s52
      %s70 = sphi 0, %s70
      %s72 = sphi 0, %s70
      %s73 = sphi 0, %s72
      %s87 = sphi 0, %s73
      %s93 = sphi 0, %s95
      %s96 = sphi 0, %s93
      %s97 = sphi 0, %s96
      %s113 = sphi 0, %s97
    $region4: #{tpu_custom_call.1} parent=1 // loop_header_branch
      %18 = sbr.rel (%p16) target = $region8
    $region5: #{tpu_custom_call.1} parent=1 // loop_body
      %s20 = ssub.s32 %s15, 1
      %s21 = ssub.s32 %s15, 2
      %s22 = sadd.s32 %s15, 1
      %s23 = ssub.s32 %s15, %s22
      %p24 = scmp.eq.s32.totalorder %s23, 0
      %s26 = sadd.s32 %s25, 1
      %s27 = scalar_select %p24, %s25, %s26
      %p30 = pneg %p24
      %p31 = scmp.eq.s32.totalorder %s15, 1
      %p32 = por %p30, %p31
      %p33 = scmp.ne.s32.totalorder %s25, %s28
      %p34 = scmp.eq.s32.totalorder %s15, 0
      %p35 = por %p33, %p34
      %p36 = scmp.ne.s32.totalorder %s25, %s28
      %p37 = scmp.eq.s32.totalorder %s20, 1
      %p38 = por %p36, %p37
      %p39 = scmp.ne.s32.totalorder %s28, %s29
      %p40 = scmp.eq.s32.totalorder %s20, 0
      %p41 = por %p39, %p40
      %p42 = scmp.ne.s32.totalorder %s28, %s29
      %p43 = scmp.eq.s32.totalorder %s21, 1
      %p44 = por %p42, %p43
      %p46 = scmp.ne.s32.totalorder %s29, %s45
      %p47 = scmp.eq.s32.totalorder %s21, 0
      %p48 = por %p46, %p47
      %s50 = sadd.s32 %s49, 1
      %p53 = scmp.eq.s32.totalorder %s15, 1
      %p54 = scmp.ne.s32.totalorder %s49, %s51
      %p55 = scmp.eq.s32.totalorder %s15, 0
      %p56 = por %p54, %p55
      %p57 = scmp.ne.s32.totalorder %s49, %s51
      %p58 = scmp.eq.s32.totalorder %s20, 1
      %p59 = por %p57, %p58
      %p60 = scmp.ne.s32.totalorder %s51, %s52
      %p61 = scmp.eq.s32.totalorder %s20, 0
      %p62 = por %p60, %p61
      %p63 = scmp.ne.s32.totalorder %s51, %s52
      %p64 = scmp.eq.s32.totalorder %s21, 1
      %p65 = por %p63, %p64
      %p67 = scmp.ne.s32.totalorder %s52, %s66
      %p68 = scmp.eq.s32.totalorder %s21, 0
      %p69 = por %p67, %p68
      %s71 = sadd.s32 %s70, 1
      %p74 = scmp.eq.s32.totalorder %s15, 1
      %p75 = scmp.ne.s32.totalorder %s70, %s72
      %p76 = scmp.eq.s32.totalorder %s15, 0
      %p77 = por %p75, %p76
      %p78 = scmp.ne.s32.totalorder %s70, %s72
      %p79 = scmp.eq.s32.totalorder %s20, 1
      %p80 = por %p78, %p79
      %p81 = scmp.ne.s32.totalorder %s72, %s73
      %p82 = scmp.eq.s32.totalorder %s20, 0
      %p83 = por %p81, %p82
      %p84 = scmp.ne.s32.totalorder %s72, %s73
      %p85 = scmp.eq.s32.totalorder %s21, 1
      %p86 = por %p84, %p85
      %p88 = scmp.ne.s32.totalorder %s73, %s87
      %p89 = scmp.eq.s32.totalorder %s21, 0
      %p90 = por %p88, %p89
      %s91 = ssub.s32 %s15, %s22
      %p92 = scmp.eq.s32.totalorder %s91, 0
      %s94 = sadd.s32 %s93, 1
      %s95 = scalar_select %p92, %s93, %s94
      %p98 = pneg %p92
      %p99 = scmp.eq.s32.totalorder %s15, 1
      %p100 = por %p98, %p99
      %p101 = scmp.ne.s32.totalorder %s93, %s96
      %p102 = scmp.eq.s32.totalorder %s15, 0
      %p103 = por %p101, %p102
      %p104 = scmp.ne.s32.totalorder %s93, %s96
      %p105 = scmp.eq.s32.totalorder %s20, 1
      %p106 = por %p104, %p105
      %p107 = scmp.ne.s32.totalorder %s96, %s97
      %p108 = scmp.eq.s32.totalorder %s20, 0
      %p109 = por %p107, %p108
      %p110 = scmp.ne.s32.totalorder %s96, %s97
      %p111 = scmp.eq.s32.totalorder %s21, 1
      %p112 = por %p110, %p111
      %p114 = scmp.ne.s32.totalorder %s97, %s113
      %p115 = scmp.eq.s32.totalorder %s21, 0
      %p116 = por %p114, %p115
      %p117 = scmp.le.s32.totalorder 1, %s15
      %p118 = scmp.lt.s32.totalorder %s15, 3
      %p119 = pnand %p117, %p118
      %p120 = pneg %p119
      // Predicated region
      $region9: #{tpu_custom_call.1} parent=5 // pred_check
        _
      $region10: #{tpu_custom_call.1} parent=5 // pred_check_branch
        %122 = sbr.rel (%p119) target = $region12
      $region11: #{tpu_custom_call.1} parent=5 // pred_region
        %s123 = ssub.s32 %s15, 1
        // Predicated region
        $region13: #{tpu_custom_call.1} parent=11 // pred_check
          %p124 = pneg %p62
        $region14: #{tpu_custom_call.1} parent=11 // pred_check_branch
          %126 = sbr.rel (%p124) target = $region16
        $region15: #{tpu_custom_call.1} parent=11 // pred_region
          _
        $region16: #{tpu_custom_call.1} parent=11 // pred_fallthru
          _
        // Predicated region
        $region17: #{tpu_custom_call.1} parent=11 // pred_check
          %p127 = pneg %p83
        $region18: #{tpu_custom_call.1} parent=11 // pred_check_branch
          %129 = sbr.rel (%p127) target = $region20
        $region19: #{tpu_custom_call.1} parent=11 // pred_region
          _
        $region20: #{tpu_custom_call.1} parent=11 // pred_fallthru
          _
      $region12: #{tpu_custom_call.1} parent=5 // pred_fallthru
        _
      %p130 = scmp.lt.s32.totalorder %s15, 2
      // Predicated region
      $region21: #{tpu_custom_call.1} parent=5 // pred_check
        %p131 = pneg %p130
      $region22: #{tpu_custom_call.1} parent=5 // pred_check_branch
        %133 = sbr.rel (%p131) target = $region24
      $region23: #{tpu_custom_call.1} parent=5 // pred_region
        // Predicated region
        $region25: #{tpu_custom_call.1} parent=23 // pred_check
          %p134 = pneg %p35
        $region26: #{tpu_custom_call.1} parent=23 // pred_check_branch
          %136 = sbr.rel (%p134) target = $region28
        $region27: #{tpu_custom_call.1} parent=23 // pred_region
          %s137 = sand.u32 %s25, 1
          %s138 = scalar_lea.sflag [#allocation3], %s137
          %s139 = sand.u32 %s25, 1
          %s140 = smul.addr %s139, 12
          %s141 = scalar_lea.vmem [#allocation2], %s140
          %s143 = ssub.s32 192, 192
          %144 = vsyncadd %s138, %s143
          %s145 = smul.addr %s15, 3
          %s146 = smul.addr %s145, 64
          %s147 = scalar_lea.hbm %s0, %s146
          %s149 = sshll.u32 %s141, 4
          %s150 = int_to_ptr.vmem [resolvable:$true] %s149
          %152 = dma.hbm_to_vmem [thread:$0]  %s147, 192, %s150, %s138
        $region28: #{tpu_custom_call.1} parent=23 // pred_fallthru
          _
      $region24: #{tpu_custom_call.1} parent=5 // pred_fallthru
        _
      %p153 = scmp.le.s32.totalorder 1, %s15
      %p154 = scmp.lt.s32.totalorder %s15, 3
      %p155 = pnand %p153, %p154
      %p156 = pneg %p155
      // Predicated region
      $region29: #{tpu_custom_call.1} parent=5 // pred_check
        _
      $region30: #{tpu_custom_call.1} parent=5 // pred_check_branch
        %158 = sbr.rel (%p155) target = $region32
      $region31: #{tpu_custom_call.1} parent=5 // pred_region
        %s159 = ssub.s32 %s15, 1
        %s160 = sand.u32 %s28, 1
        %s161 = scalar_lea.sflag [#allocation3], %s160
        %s162 = sand.u32 %s28, 1
        %s163 = smul.addr %s162, 12
        %s164 = scalar_lea.vmem [#allocation2], %s163
        // Predicated region
        $region33: #{tpu_custom_call.1} parent=31 // pred_check
          %p165 = pneg %p41
        $region34: #{tpu_custom_call.1} parent=31 // pred_check_branch
          %167 = sbr.rel (%p165) target = $region36
        $region35: #{tpu_custom_call.1} parent=31 // pred_region
          %168 = dma.done %s161, 192
        $region36: #{tpu_custom_call.1} parent=31 // pred_fallthru
          _
        %s169 = sand.u32 %s28, 1
        %s170 = scalar_lea.sflag [#allocation3], %s169
        %s171 = sand.u32 %s28, 1
        %s172 = smul.addr %s171, 12
        %s173 = scalar_lea.vmem [#allocation2], %s172
        %p174 = pneg %p41
        %p175 = pneg %p38
        %p176 = pneg %p62
        %p177 = pneg %p59
        %p178 = pneg %p83
        %p179 = pneg %p80
        %p180 = pneg %p109
        %p181 = pneg %p106
        %s182 = sand.u32 %s96, 1
        %s183 = scalar_lea.sflag [#allocation4], %s182
        %s184 = sand.u32 %s96, 1
        %s185 = smul.addr %s184, 24
        %s186 = scalar_lea.vmem [#allocation5], %s185
        %v188 = vld [vmem:[%s1] sm:$0xf]
        %v189 = vld [vmem:[%s2] sm:$0xff]
        %v190 = vld [vmem:[%s164] sm:$0xff]
        %v191 = vld [vmem:[%s164 + $0x8] sm:$0xf]
        %v192 = vunpack.c.l.bf16 %v190
        %v193 = vunpack.c.h.bf16 %v190
        %v194 = vunpack.c.l.bf16 %v191
        %198 = vrot.lane.b32.xlu0 %v192, 127
        %v199 = vpop.permute.xlu0 %198
        %200 = vrot.lane.b32.xlu0 %v193, 127
        %v201 = vpop.permute.xlu0 %200
        %202 = vrot.lane.b32.xlu0 %v194, 127
        %v203 = vpop.permute.xlu0 %202
        %vm204 = vcmask 1039360
        %v205 = vsel %vm204, %v199, %v201
        %v206 = vsel %vm204, %v201, %v203
        %210 = vrot.lane.b32.xlu0 %v192, 126
        %v211 = vpop.permute.xlu0 %210
        %212 = vrot.lane.b32.xlu0 %v193, 126
        %v213 = vpop.permute.xlu0 %212
        %214 = vrot.lane.b32.xlu0 %v194, 126
        %v215 = vpop.permute.xlu0 %214
        %vm216 = vcmask 1031168
        %v217 = vsel %vm216, %v211, %v213
        %v218 = vsel %vm216, %v213, %v215
        %222 = vrot.lane.b32.xlu0 %v192, 110
        %v223 = vpop.permute.xlu0 %222
        %224 = vrot.lane.b32.xlu0 %v193, 110
        %v225 = vpop.permute.xlu0 %224
        %226 = vrot.lane.b32.xlu0 %v194, 110
        %v227 = vpop.permute.xlu0 %226
        %vm228 = vcmask 900096
        %v229 = vsel %vm228, %v223, %v225
        %v230 = vsel %vm228, %v225, %v227
        %234 = vrot.lane.b32.xlu0 %v192, 109
        %v235 = vpop.permute.xlu0 %234
        %236 = vrot.lane.b32.xlu0 %v193, 109
        %v237 = vpop.permute.xlu0 %236
        %238 = vrot.lane.b32.xlu0 %v194, 109
        %v239 = vpop.permute.xlu0 %238
        %vm240 = vcmask 891904
        %v241 = vsel %vm240, %v235, %v237
        %v242 = vsel %vm240, %v237, %v239
        %246 = vrot.lane.b32.xlu0 %v192, 108
        %v247 = vpop.permute.xlu0 %246
        %248 = vrot.lane.b32.xlu0 %v193, 108
        %v249 = vpop.permute.xlu0 %248
        %250 = vrot.lane.b32.xlu0 %v194, 108
        %v251 = vpop.permute.xlu0 %250
        %vm252 = vcmask 883712
        %v253 = vsel %vm252, %v247, %v249
        %v254 = vsel %vm252, %v249, %v251
        %258 = vrot.lane.b32.xlu0 %v192, 92
        %v259 = vpop.permute.xlu0 %258
        %260 = vrot.lane.b32.xlu0 %v193, 92
        %v261 = vpop.permute.xlu0 %260
        %262 = vrot.lane.b32.xlu0 %v194, 92
        %v263 = vpop.permute.xlu0 %262
        %vm264 = vcmask 752640
        %v265 = vsel %vm264, %v259, %v261
        %v266 = vsel %vm264, %v261, %v263
        %270 = vrot.lane.b32.xlu0 %v192, 91
        %v271 = vpop.permute.xlu0 %270
        %272 = vrot.lane.b32.xlu0 %v193, 91
        %v273 = vpop.permute.xlu0 %272
        %274 = vrot.lane.b32.xlu0 %v194, 91
        %v275 = vpop.permute.xlu0 %274
        %vm276 = vcmask 744448
        %v277 = vsel %vm276, %v271, %v273
        %v278 = vsel %vm276, %v273, %v275
        %282 = vrot.lane.b32.xlu0 %v192, 90
        %v283 = vpop.permute.xlu0 %282
        %284 = vrot.lane.b32.xlu0 %v193, 90
        %v285 = vpop.permute.xlu0 %284
        %286 = vrot.lane.b32.xlu0 %v194, 90
        %v287 = vpop.permute.xlu0 %286
        %vm288 = vcmask 736256
        %v289 = vsel %vm288, %v283, %v285
        %v290 = vsel %vm288, %v285, %v287
        %v294 = vpack.c.bf16 %v205, %v192
        %v295 = vpack.c.bf16 %v206, %v193
        %v296 = vpack.c.bf16 %v203, %v194
        %v297 = vpack.c.bf16 %v229, %v217
        %v298 = vpack.c.bf16 %v230, %v218
        %v299 = vpack.c.bf16 %v227, %v215
        %v300 = vpack.c.bf16 %v253, %v241
        %v301 = vpack.c.bf16 %v254, %v242
        %v302 = vpack.c.bf16 %v251, %v239
        %v303 = vpack.c.bf16 %v277, %v265
        %v304 = vpack.c.bf16 %v278, %v266
        %v305 = vpack.c.bf16 %v275, %v263
        %v306 = vpack.c.bf16 %v289, %v289
        %v307 = vpack.c.bf16 %v290, %v290
        %v308 = vpack.c.bf16 %v287, %v287
        %310 = vset.pattern.permute.xlu0 0
        %311 = vperm.xlu0 %310, %v189
        %v312 = vpop.permute.xlu0 %311
        %vm314 = vcmask 588800
        %v316 = vsel %vm314, %v188, 0
        %vm318 = vcmask 1043456
        %v320 = vsel %vm318, %v306, 0
        %v323 = vsel %vm318, %v307, 0
        %v326 = vsel %vm318, %v308, 0
        %328 = vmatprep.subr.bf16.mxu0 0
        %329 = vmatpush1.bf16.msra.mxu0 0
        %330 = vmatprep.subr.bf16.mxu0 0
        %331 = vmatpush1.bf16.msra.mxu0 0
        %332 = vmatprep.subr.bf16.mxu0 0
        %333 = vmatpush1.bf16.msra.mxu0 0
        %334 = vmatprep.subr.bf16.mxu0 %v323
        %335 = vmatpush1.bf16.msra.mxu0 %v320
        %336 = vmatprep.subr.bf16.mxu0 %v304
        %337 = vmatpush1.bf16.msra.mxu0 %v303
        %338 = vmatprep.subr.bf16.mxu0 %v301
        %339 = vmatpush1.bf16.msra.mxu0 %v300
        %340 = vmatprep.subr.bf16.mxu0 %v298
        %341 = vmatpush1.bf16.msra.mxu0 %v297
        %342 = vmatprep.subr.bf16.mxu0 %v295
        %343 = vmatpush1.bf16.msra.mxu0 %v294
        %344 = vmatprep.subr.bf16.mxu0 0
        %345 = vmatpush2.bf16.msra.mxu0 0
        %346 = vmatprep.subr.bf16.mxu0 0
        %347 = vmatpush2.bf16.msra.mxu0 0
        %348 = vmatprep.subr.bf16.mxu0 0
        %349 = vmatpush2.bf16.msra.mxu0 0
        %350 = vmatprep.subr.bf16.mxu0 0
        %351 = vmatpush2.bf16.msra.mxu0 0
        %352 = vmatprep.subr.bf16.mxu0 0
        %353 = vmatpush2.bf16.msra.mxu0 0
        %354 = vmatprep.subr.bf16.mxu0 0
        %355 = vmatpush2.bf16.msra.mxu0 0
        %356 = vmatprep.subr.bf16.mxu0 0
        %357 = vmatpush2.bf16.msra.mxu0 0
        %358 = vmatprep.subr.bf16.mxu0 0
        %359 = vmatpush2.bf16.msra.mxu0 0
        %360 = vmatprep.mubr.bf16.mxu0 0
        %361 = vmatmul.mubr.bf16.gmra.mxu0 %v316
        %v362 = vpop.f32.mrf.mxu0
        %v363 = vadd.f32 %v312, %v362
        %v364 = vpop.f32.mrf.mxu0
        %v365 = vadd.f32 %v312, %v364
        %v366 = vpop.f32.mrf.mxu0
        %v367 = vpop.f32.mrf.mxu0
        %368 = vdwg.mxu0
        %369 = vmatprep.subr.bf16.mxu0 0
        %370 = vmatpush1.bf16.msra.mxu0 0
        %371 = vmatprep.subr.bf16.mxu0 0
        %372 = vmatpush1.bf16.msra.mxu0 0
        %373 = vmatprep.subr.bf16.mxu0 0
        %374 = vmatpush1.bf16.msra.mxu0 0
        %375 = vmatprep.subr.bf16.mxu0 0
        %376 = vmatpush1.bf16.msra.mxu0 %v326
        %377 = vmatprep.subr.bf16.mxu0 0
        %378 = vmatpush1.bf16.msra.mxu0 %v305
        %379 = vmatprep.subr.bf16.mxu0 0
        %380 = vmatpush1.bf16.msra.mxu0 %v302
        %381 = vmatprep.subr.bf16.mxu0 0
        %382 = vmatpush1.bf16.msra.mxu0 %v299
        %383 = vmatprep.subr.bf16.mxu0 0
        %384 = vmatpush1.bf16.msra.mxu0 %v296
        %385 = vmatprep.subr.bf16.mxu0 0
        %386 = vmatpush2.bf16.msra.mxu0 0
        %387 = vmatprep.subr.bf16.mxu0 0
        %388 = vmatpush2.bf16.msra.mxu0 0
        %389 = vmatprep.subr.bf16.mxu0 0
        %390 = vmatpush2.bf16.msra.mxu0 0
        %391 = vmatprep.subr.bf16.mxu0 0
        %392 = vmatpush2.bf16.msra.mxu0 0
        %393 = vmatprep.subr.bf16.mxu0 0
        %394 = vmatpush2.bf16.msra.mxu0 0
        %395 = vmatprep.subr.bf16.mxu0 0
        %396 = vmatpush2.bf16.msra.mxu0 0
        %397 = vmatprep.subr.bf16.mxu0 0
        %398 = vmatpush2.bf16.msra.mxu0 0
        %399 = vmatprep.subr.bf16.mxu0 0
        %400 = vmatpush2.bf16.msra.mxu0 0
        %401 = vmatprep.mubr.bf16.mxu0 0
        %402 = vmatmul.mubr.bf16.gmra.mxu0 %v316
        %v403 = vpop.f32.mrf.mxu0
        %v404 = vadd.f32 %v312, %v403
        %v405 = vpop.f32.mrf.mxu0
        %v406 = vpop.f32.mrf.mxu0
        %v407 = vpop.f32.mrf.mxu0
        %408 = vdwg.mxu0
        %409 = vst [vmem:[%s186] sm:$0xff] %v363
        %410 = vst [vmem:[%s186 + $0x8] sm:$0xff] %v365
        %vm411 = vcmask 261120
        %412 = vst.msk [vmem:[%s186 + $0x10] sm:$0xff] %vm411, %v404
        %s413 = sand.u32 %s96, 1
        %s414 = scalar_lea.sflag [#allocation4], %s413
        %s415 = sand.u32 %s96, 1
        %s416 = smul.addr %s415, 24
        %s417 = scalar_lea.vmem [#allocation5], %s416
        // Predicated region
        $region37: #{tpu_custom_call.1} parent=31 // pred_check
          %p418 = pneg %p106
        $region38: #{tpu_custom_call.1} parent=31 // pred_check_branch
          %420 = sbr.rel (%p418) target = $region40
        $region39: #{tpu_custom_call.1} parent=31 // pred_region
          %s422 = ssub.s32 384, 384
          %423 = vsyncadd %s414, %s422
          %s424 = smul.addr %s20, 3
          %s425 = smul.addr %s424, 128
          %s426 = scalar_lea.hbm %s3, %s425
          %s428 = sshll.u32 %s417, 4
          %s429 = int_to_ptr.vmem [resolvable:$true] %s428
          %431 = dma.vmem_to_hbm [thread:$0]  %s429, 384, %s426, %s414
        $region40: #{tpu_custom_call.1} parent=31 // pred_fallthru
          _
      $region32: #{tpu_custom_call.1} parent=5 // pred_fallthru
        _
      %p432 = scmp.le.s32.totalorder 2, %s15
      // Predicated region
      $region41: #{tpu_custom_call.1} parent=5 // pred_check
        %p433 = pneg %p432
      $region42: #{tpu_custom_call.1} parent=5 // pred_check_branch
        %435 = sbr.rel (%p433) target = $region44
      $region43: #{tpu_custom_call.1} parent=5 // pred_region
        %s436 = ssub.s32 %s15, 2
        // Predicated region
        $region45: #{tpu_custom_call.1} parent=43 // pred_check
          %p437 = pneg %p112
        $region46: #{tpu_custom_call.1} parent=43 // pred_check_branch
          %439 = sbr.rel (%p437) target = $region48
        $region47: #{tpu_custom_call.1} parent=43 // pred_region
          %s440 = sand.u32 %s97, 1
          %s441 = scalar_lea.sflag [#allocation4], %s440
          %s442 = sand.u32 %s97, 1
          %s443 = smul.addr %s442, 24
          %s444 = scalar_lea.vmem [#allocation5], %s443
          %445 = dma.done %s441, 384
        $region48: #{tpu_custom_call.1} parent=43 // pred_fallthru
          _
      $region44: #{tpu_custom_call.1} parent=5 // pred_fallthru
        _
    $region6: #{tpu_custom_call.1} parent=1 // loop_footer
      %s19 = sadd.s32 1, %s15
    $region7: #{tpu_custom_call.1} parent=1 // loop_footer_branch
      %14 = sbr.rel target = $region3
    $region8: #{tpu_custom_call.1} parent=1 // loop_exit
      _
    %446 = vsyncpa [#allocation3], 1
    %s447 = scalar_lea.sflag [#allocation3], 1
    %448 = vsyncpa %s447, 1
    %449 = vsyncpa [#allocation4], 1
    %s450 = scalar_lea.sflag [#allocation4], 1
    %451 = vsyncpa %s450, 1

</llo_original>
